<compile_context>
chip_gen: v5e
topology: v5e:2x2
jax: 0.10.0
libtpu: 0.0.40
codegen_flags: <defaults>
</compile_context>

<pallas_src>
import jax
import jax.numpy as jnp
from jax.experimental import pallas as pl
from jax.experimental.pallas import tpu as pltpu

# ------------------------- static config -------------------------
C_SEM = 8                             # out_semantics
NUM_THINGS = 3
C_INS = 1 + 2 + 1 + NUM_THINGS        # center, offset(2), edge, density(num_things)
C_TOTAL = C_SEM + C_INS               # 15
COND_ROWS = 2 * C_SEM + NUM_THINGS    # 19: [sem_scale | sem_eps | ins_cond]
FILTER_COND = True
EPS = 1e-6
PAD_VAL = -1e30                       # exp() underflows to 0 -> padded lanes never perturb softmax


def _mid_scale():
    # Per-channel pre/post scale for the fused sigmoid over [center, off_x, off_y, edge]:
    #   sigmoid(x) = 1 * sigmoid(1*x) + 0         (pre = 1)
    #   tanh(x)    = 2 * sigmoid(2*x) - 1         (pre = 2)
    ch = jax.lax.broadcasted_iota(jnp.int32, (1, 4, 1), 1)
    is_offset = (ch >= 1) & (ch <= 2)
    return jnp.where(is_offset, 2.0, 1.0).astype(jnp.float32)


# ------------------------- single-pass kernel (full HW in block) -------------------------
def _fused_kernel(x_ref, cond_ref, out_ref):
    # x_ref/out_ref: (Bb, C_TOTAL, HWp); cond_ref: (Bb, COND_ROWS, 1)
    f32 = jnp.float32

    # ---- semantic branch: spatial softmax * cond, channel-normalized ----
    sem = x_ref[:, 0:C_SEM, :].astype(f32)
    m = jnp.max(sem, axis=-1, keepdims=True)
    e = jnp.exp(sem - m)
    inv_sp = pl.reciprocal(jnp.sum(e, axis=-1, keepdims=True), approx=False)
    sem_scale = cond_ref[:, 0:C_SEM, :].astype(f32)          # thresholded cond * H*W
    sem_eps = cond_ref[:, C_SEM:2 * C_SEM, :].astype(f32)    # EPS where cond > 0.002
    sem_mask = e * (inv_sp * sem_scale) + sem_eps
    inv_ch = pl.reciprocal(jnp.sum(sem_mask, axis=1, keepdims=True), approx=False)
    out_ref[:, 0:C_SEM, :] = (sem_mask * inv_ch).astype(out_ref.dtype)
    # TODO(synk): alpha.size(0) > 0 branch (nearest-resize of `sem` + convex blend) is not
    # implemented; this kernel covers the empty-alpha path only.

    # ---- center / offset / edge: one fused sigmoid over 4 channels ----
    mid = x_ref[:, C_SEM:C_SEM + 4, :].astype(f32)
    pre = _mid_scale()
    sig = jax.nn.sigmoid(mid * pre)
    out_ref[:, C_SEM:C_SEM + 4, :] = (sig * pre + (1.0 - pre)).astype(out_ref.dtype)

    # ---- density: spatial softmax * ins_cond ----
    dens = x_ref[:, C_SEM + 4:C_TOTAL, :].astype(f32)
    md = jnp.max(dens, axis=-1, keepdims=True)
    ed = jnp.exp(dens - md)
    inv_d = pl.reciprocal(jnp.sum(ed, axis=-1, keepdims=True), approx=False)
    ins_cond = cond_ref[:, 2 * C_SEM:COND_ROWS, :].astype(f32)
    out_ref[:, C_SEM + 4:C_TOTAL, :] = (ed * (inv_d * ins_cond)).astype(out_ref.dtype)


# ------------------------- two-pass kernels (HW tiled on the grid) -------------------------
def _stats_kernel(x_ref, m_out_ref, l_out_ref, m_sc, l_sc):
    # Pass 1: online-softmax stats (running max, running sum-of-exp) over HW tiles.
    # x_ref: (1, C_TOTAL, Thw); outputs/scratch: (1, C_TOTAL, 1) f32.
    # NOTE: also streams the 4 sigmoid/tanh channels (their stats are unused); a
    # channel-split spec could trim ~27% of pass-1 reads at the cost of layout code.
    hw = pl.program_id(1)

    @pl.when(hw == 0)
    def _():
        m_sc[...] = jnp.full_like(m_sc, -3.0e38)
        l_sc[...] = jnp.zeros_like(l_sc)

    x = x_ref[...].astype(jnp.float32)
    local_max = jnp.max(x, axis=-1, keepdims=True)
    m_new = jnp.maximum(m_sc[...], local_max)
    l_sc[...] = l_sc[...] * jnp.exp(m_sc[...] - m_new) + jnp.sum(
        jnp.exp(x - m_new), axis=-1, keepdims=True)
    m_sc[...] = m_new

    @pl.when(hw == pl.num_programs(1) - 1)
    def _():
        m_out_ref[...] = m_sc[...]
        l_out_ref[...] = l_sc[...]


def _finish_kernel(x_ref, cond_ref, m_ref, l_ref, out_ref):
    # Pass 2: purely elementwise normalize + activations; HW tiled freely.
    f32 = jnp.float32
    m = m_ref[...]
    inv_l = pl.reciprocal(l_ref[...], approx=False)

    sem = x_ref[:, 0:C_SEM, :].astype(f32)
    sem_soft = jnp.exp(sem - m[:, 0:C_SEM, :]) * inv_l[:, 0:C_SEM, :]
    sem_scale = cond_ref[:, 0:C_SEM, :].astype(f32)
    sem_eps = cond_ref[:, C_SEM:2 * C_SEM, :].astype(f32)
    sem_mask = sem_soft * sem_scale + sem_eps
    inv_ch = pl.reciprocal(jnp.sum(sem_mask, axis=1, keepdims=True), approx=False)
    out_ref[:, 0:C_SEM, :] = (sem_mask * inv_ch).astype(out_ref.dtype)

    mid = x_ref[:, C_SEM:C_SEM + 4, :].astype(f32)
    pre = _mid_scale()
    sig = jax.nn.sigmoid(mid * pre)
    out_ref[:, C_SEM:C_SEM + 4, :] = (sig * pre + (1.0 - pre)).astype(out_ref.dtype)

    dens = x_ref[:, C_SEM + 4:C_TOTAL, :].astype(f32)
    d_soft = jnp.exp(dens - m[:, C_SEM + 4:C_TOTAL, :]) * inv_l[:, C_SEM + 4:C_TOTAL, :]
    ins_cond = cond_ref[:, 2 * C_SEM:COND_ROWS, :].astype(f32)
    out_ref[:, C_SEM + 4:C_TOTAL, :] = (d_soft * ins_cond).astype(out_ref.dtype)


# ------------------------- sizing helpers -------------------------
def _vmem_capacity_bytes():
    try:
        cap = getattr(pltpu.get_tpu_info(), "vmem_capacity_bytes", None)
        if cap:
            return int(cap)
    except Exception:
        pass
    return 64 * 1024 * 1024  # conservative fallback: v7x per-TC VMEM


def _vmem_limit(live_bytes, vmem_cap):
    # >= 16 MiB, <= 3/4 of physical VMEM (leave Mosaic internal-scratch headroom).
    return int(min(max(live_bytes + (2 << 20), 16 << 20), (vmem_cap * 3) // 4))


# ------------------------- dispatch paths -------------------------
def _single_pass(x3, cond_pack, B, C, HWp, bytes_per_batch, block_cap, vmem_cap):
    # Batch block as big as the cap allows, but keep >= 2 (preferably 4) grid steps
    # so the 'parallel' axis shards across v7x's 2 TensorCores and the pipeline
    # overlaps prefetch/writeback with compute.
    target_steps = 4 if B >= 4 else B
    max_bb = max(1, block_cap // bytes_per_batch)
    if target_steps > 1:
        max_bb = min(max_bb, max(1, B // target_steps))
    Bb = max(1, min(B, max_bb))
    while B % Bb != 0:
        Bb -= 1
    grid = (B // Bb,)
    block_bytes = Bb * bytes_per_batch

    return pl.pallas_call(
        _fused_kernel,
        out_shape=jax.ShapeDtypeStruct((B, C, HWp), x3.dtype),
        grid=grid,
        in_specs=[
            pl.BlockSpec((Bb, C, HWp), lambda b: (b, 0, 0)),
            pl.BlockSpec((Bb, COND_ROWS, 1), lambda b: (b, 0, 0)),
        ],
        out_specs=pl.BlockSpec((Bb, C, HWp), lambda b: (b, 0, 0)),
        compiler_params=pltpu.CompilerParams(
            dimension_semantics=("parallel",),
            vmem_limit_bytes=_vmem_limit(6 * block_bytes, vmem_cap),
        ),
    )(x3, cond_pack)


def _two_pass(x3, cond_pack, B, C, HWp, itemsize, block_cap, vmem_cap):
    # HW-tiled path for images whose full spatial extent does not fit one block
    # (e.g. 512x512 f32 on v7x): decouples tile size from image size.
    n128 = HWp // 128
    Thw = 128
    for c in range(1, n128 + 1):
        if n128 % c == 0 and C * (c * 128) * itemsize <= block_cap:
            Thw = c * 128
    n_hw = HWp // Thw
    block_bytes = C * Thw * itemsize

    stats_shape = jax.ShapeDtypeStruct((B, C, 1), jnp.float32)
    m_stats, l_stats = pl.pallas_call(
        _stats_kernel,
        out_shape=(stats_shape, stats_shape),
        grid=(B, n_hw),
        in_specs=[pl.BlockSpec((1, C, Thw), lambda b, h: (b, 0, h))],
        out_specs=(
            pl.BlockSpec((1, C, 1), lambda b, h: (b, 0, 0)),
            pl.BlockSpec((1, C, 1), lambda b, h: (b, 0, 0)),
        ),
        scratch_shapes=[pltpu.VMEM((1, C, 1), jnp.float32),
                        pltpu.VMEM((1, C, 1), jnp.float32)],
        compiler_params=pltpu.CompilerParams(
            dimension_semantics=("parallel", "arbitrary"),
            vmem_limit_bytes=_vmem_limit(3 * block_bytes, vmem_cap),
        ),
    )(x3)

    return pl.pallas_call(
        _finish_kernel,
        out_shape=jax.ShapeDtypeStruct((B, C, HWp), x3.dtype),
        grid=(B, n_hw),
        in_specs=[
            pl.BlockSpec((1, C, Thw), lambda b, h: (b, 0, h)),
            pl.BlockSpec((1, COND_ROWS, 1), lambda b, h: (b, 0, 0)),
            pl.BlockSpec((1, C, 1), lambda b, h: (b, 0, 0)),
            pl.BlockSpec((1, C, 1), lambda b, h: (b, 0, 0)),
        ],
        out_specs=pl.BlockSpec((1, C, Thw), lambda b, h: (b, 0, h)),
        compiler_params=pltpu.CompilerParams(
            dimension_semantics=("parallel", "parallel"),
            vmem_limit_bytes=_vmem_limit(6 * block_bytes, vmem_cap),
        ),
    )(x3, cond_pack, m_stats, l_stats)


# ------------------------- wrapper -------------------------
def assisted_activation(x, sem_cond, ins_cond, *, max_block_bytes=None):
    """x: (B, 15, H, W) NCHW; sem_cond: (B, 8); ins_cond: (B, 3). Returns (B, 15, H, W).

    Faithful to AssistedActivation.forward with cond={'sem_cond','ins_cond'} and empty
    alpha. I/O dtype is preserved (pass bf16 x to halve HBM traffic on v5e/v6e);
    in-kernel compute is f32.
    """
    B, C, H, W = x.shape
    assert C == C_TOTAL
    HW = H * W

    # ---- tiny (B, 19, 1) conditioning, precomputed once outside the kernel ----
    sc = sem_cond.astype(jnp.float32)
    if FILTER_COND:
        sc = jnp.where(sc < 1.0 / HW, 0.0, sc)
        # NOTE: faithful to the module -- sum may be 0 (-> NaN) if every entry filters out.
        sc = sc / jnp.sum(sc, axis=1, keepdims=True)
    sc = jnp.where(sc < 0.002, 0.0, sc)
    cond_pack = jnp.concatenate(
        [sc * jnp.float32(HW),
         jnp.where(sc > 0.002, jnp.float32(EPS), 0.0),
         ins_cond.astype(jnp.float32)],
        axis=1).reshape(B, COND_ROWS, 1)

    # ---- lane-dense layout: (B, C, HWp) with HWp % 128 == 0 ----
    x3 = x.reshape(B, C, HW)
    HWp = ((HW + 127) // 128) * 128
    if HWp != HW:
        x3 = jnp.pad(x3, ((0, 0), (0, 0), (0, HWp - HW)), constant_values=PAD_VAL)

    itemsize = jnp.dtype(x.dtype).itemsize
    vmem_cap = _vmem_capacity_bytes()
    # ~6x block bytes live in the fused kernel (2x in + 2x out double buffers + f32
    # temps) -> cap one block at VMEM/8: ~8 MiB on v7x, ~16 MiB on v5e/v6e.
    block_cap = (vmem_cap // 8) if max_block_bytes is None else int(max_block_bytes)
    bytes_per_batch = C * HWp * itemsize

    if bytes_per_batch <= block_cap:
        out3 = _single_pass(x3, cond_pack, B, C, HWp, bytes_per_batch, block_cap, vmem_cap)
    else:
        out3 = _two_pass(x3, cond_pack, B, C, HWp, itemsize, block_cap, vmem_cap)

    if HWp != HW:
        out3 = out3[:, :, :HW]
    return out3.reshape(B, C, H, W)


# ------------------------- pure-JAX reference -------------------------
def reference(x, sem_cond, ins_cond):
    B, C, H, W = x.shape
    HW = H * W
    xr = x.reshape(B, C, HW).astype(jnp.float32)

    sem = xr[:, :C_SEM]
    sc = sem_cond.astype(jnp.float32)
    if FILTER_COND:
        sc = jnp.where(sc < 1.0 / HW, 0.0, sc)
        sc = sc / jnp.sum(sc, axis=1, keepdims=True)
    sem = jax.nn.softmax(sem, axis=2)
    sc = jnp.where(sc < 0.002, 0.0, sc)
    sem_mask = sem * sc[:, :, None] * HW
    sem_mask = sem_mask + jnp.where(sc > 0.002, EPS, 0.0)[:, :, None]
    sem_out = sem_mask / jnp.sum(sem_mask, axis=1, keepdims=True)

    base = C_SEM
    center = jax.nn.sigmoid(xr[:, base:base + 1])
    offset = jnp.tanh(xr[:, base + 1:base + 3])
    edge = jax.nn.sigmoid(xr[:, base + 3:base + 4])
    dens = jax.nn.softmax(xr[:, base + 4:], axis=2) * ins_cond.astype(jnp.float32)[:, :, None]

    out = jnp.concatenate([sem_out, center, offset, edge, dens], axis=1)
    return out.reshape(B, C, H, W)


# ------------------------- main -------------------------
def _run_case(key, B, H, W, max_block_bytes=None):
    k1, k2, k3 = jax.random.split(key, 3)
    x = jax.random.normal(k1, (B, C_TOTAL, H, W), dtype=jnp.float32)
    sem_cond = jax.random.uniform(k2, (B, C_SEM), dtype=jnp.float32)       # class presence priors
    ins_cond = jax.random.uniform(k3, (B, NUM_THINGS), dtype=jnp.float32)  # instance-count priors

    out = jax.block_until_ready(
        assisted_activation(x, sem_cond, ins_cond, max_block_bytes=max_block_bytes))
    ref = jax.block_until_ready(reference(x, sem_cond, ins_cond))
    assert out.shape == (B, C_TOTAL, H, W)
    err = float(jnp.max(jnp.abs(out.astype(jnp.float32) - ref)))
    assert jnp.allclose(out.astype(jnp.float32), ref, rtol=1e-5, atol=1e-5), err


if __name__ == "__main__":
    key = jax.random.PRNGKey(0)
    k_a, k_b, k_c = jax.random.split(key, 3)

    # 1) HW % 128 == 0 -> single fused pass, batch-parallel grid of 2 steps.
    _run_case(k_a, B=2, H=16, W=16)
    # 2) HW % 128 != 0 -> wrapper pads HW 64 -> 128 (lane-dense stores), single pass.
    _run_case(k_b, B=3, H=8, W=8)
    # 3) Force the HW-tiled two-pass path (used for production-size images that exceed
    #    the per-generation VMEM block cap) on a small shape to validate it end-to-end.
    _run_case(k_c, B=2, H=16, W=16, max_block_bytes=8 * 1024)

    print("KERNEL_OK")
</pallas_src>

<mosaic_0001>
module attributes {stable_mosaic.version = 11 : i64} {
  func.func @_fused_kernel(%arg0: i32, %arg1: memref<1x15x256xf32, #tpu.memory_space<vmem>>, %arg2: memref<1x19x1xf32, #tpu.memory_space<vmem>>, %arg3: memref<1x15x256xf32, #tpu.memory_space<vmem>>) attributes {dimension_semantics = [#tpu.dimension_semantics<parallel>], iteration_bounds = array<i64: 2>, scalar_prefetch = 0 : i64, scratch_operands = 0 : i64, tpu.core_type = #tpu.core_type<tc>, window_params = [{transform_indices = @transform_0, window_bounds = array<i64: 1, 15, 256>}, {transform_indices = @transform_1, window_bounds = array<i64: 1, 19, 1>}, {transform_indices = @transform_2, window_bounds = array<i64: 1, 15, 256>}]} {
    %c0 = arith.constant 0 : index
    %c0_0 = arith.constant 0 : index
    %c0_1 = arith.constant 0 : index
    %0 = vector.load %arg1[%c0, %c0_0, %c0_1] : memref<1x15x256xf32, #tpu.memory_space<vmem>>, vector<1x8x256xf32>
    %cst = arith.constant dense<0xFF800000> : vector<1x8xf32>
    %1 = vector.multi_reduction <maximumf>, %0, %cst [2] : vector<1x8x256xf32> to vector<1x8xf32>
    %2 = vector.shape_cast %1 : vector<1x8xf32> to vector<1x8x1xf32>
    %3 = vector.broadcast %2 : vector<1x8x1xf32> to vector<1x8x256xf32>
    %4 = arith.subf %0, %3 : vector<1x8x256xf32>
    %5 = math.exp %4 : vector<1x8x256xf32>
    %cst_2 = arith.constant dense<0.000000e+00> : vector<1x8xf32>
    %6 = vector.multi_reduction <add>, %5, %cst_2 [2] : vector<1x8x256xf32> to vector<1x8xf32>
    %7 = vector.shape_cast %6 : vector<1x8xf32> to vector<1x8x1xf32>
    %8 = tpu.reciprocal %7 : vector<1x8x1xf32> -> vector<1x8x1xf32>
    %c0_3 = arith.constant 0 : index
    %c0_4 = arith.constant 0 : index
    %c0_5 = arith.constant 0 : index
    %9 = vector.load %arg2[%c0_3, %c0_4, %c0_5] : memref<1x19x1xf32, #tpu.memory_space<vmem>>, vector<1x8x1xf32>
    %c0_6 = arith.constant 0 : index
    %c8 = arith.constant 8 : index
    %c0_7 = arith.constant 0 : index
    %10 = vector.load %arg2[%c0_6, %c8, %c0_7] : memref<1x19x1xf32, #tpu.memory_space<vmem>>, vector<1x8x1xf32>
    %11 = arith.mulf %8, %9 : vector<1x8x1xf32>
    %12 = vector.broadcast %11 : vector<1x8x1xf32> to vector<1x8x256xf32>
    %13 = arith.mulf %5, %12 : vector<1x8x256xf32>
    %14 = vector.broadcast %10 : vector<1x8x1xf32> to vector<1x8x256xf32>
    %15 = arith.addf %13, %14 : vector<1x8x256xf32>
    %cst_8 = arith.constant dense<0.000000e+00> : vector<1x256xf32>
    %16 = vector.multi_reduction <add>, %15, %cst_8 [1] : vector<1x8x256xf32> to vector<1x256xf32>
    %17 = vector.shape_cast %16 : vector<1x256xf32> to vector<1x1x256xf32>
    %18 = tpu.reciprocal %17 : vector<1x1x256xf32> -> vector<1x1x256xf32>
    %19 = vector.broadcast %18 : vector<1x1x256xf32> to vector<1x8x256xf32>
    %20 = arith.mulf %15, %19 : vector<1x8x256xf32>
    %c0_9 = arith.constant 0 : index
    %c0_10 = arith.constant 0 : index
    %c0_11 = arith.constant 0 : index
    %21 = vector.load %arg3[%c0_9, %c0_10, %c0_11] : memref<1x15x256xf32, #tpu.memory_space<vmem>>, vector<1x8x256xf32>
    tpu.vector_store %arg3[%c0_9, %c0_10, %c0_11], %20 {strides = array<i32>} : memref<1x15x256xf32, #tpu.memory_space<vmem>>, vector<1x8x256xf32>,
    %c0_12 = arith.constant 0 : index
    %c8_13 = arith.constant 8 : index
    %c0_14 = arith.constant 0 : index
    %22 = vector.load %arg1[%c0_12, %c8_13, %c0_14] : memref<1x15x256xf32, #tpu.memory_space<vmem>>, vector<1x4x256xf32>
    %23 = tpu.iota {dimensions = array<i32: 1>} : vector<1x4x1xi32>
    %c1_i32 = arith.constant 1 : i32
    %24 = vector.broadcast %c1_i32 : i32 to vector<1x4x1xi32>
    %25 = arith.cmpi sge, %23, %24 : vector<1x4x1xi32>
    %c2_i32 = arith.constant 2 : i32
    %26 = vector.broadcast %c2_i32 : i32 to vector<1x4x1xi32>
    %27 = arith.cmpi sle, %23, %26 : vector<1x4x1xi32>
    %28 = arith.andi %25, %27 : vector<1x4x1xi1>
    %cst_15 = arith.constant 2.000000e+00 : f32
    %cst_16 = arith.constant 1.000000e+00 : f32
    %29 = vector.broadcast %cst_15 : f32 to vector<1x4x1xf32>
    %30 = vector.broadcast %cst_16 : f32 to vector<1x4x1xf32>
    %31 = arith.select %28, %29, %30 : vector<1x4x1xi1>, vector<1x4x1xf32>
    %32 = vector.broadcast %31 : vector<1x4x1xf32> to vector<1x4x256xf32>
    %33 = arith.mulf %22, %32 : vector<1x4x256xf32>
    %34 = arith.negf %33 : vector<1x4x256xf32>
    %35 = math.exp %34 : vector<1x4x256xf32>
    %cst_17 = arith.constant 1.000000e+00 : f32
    %36 = vector.broadcast %cst_17 : f32 to vector<1x4x256xf32>
    %37 = arith.addf %36, %35 : vector<1x4x256xf32>
    %38 = arith.divf %36, %37 : vector<1x4x256xf32>
    %39 = vector.broadcast %31 : vector<1x4x1xf32> to vector<1x4x256xf32>
    %40 = arith.mulf %38, %39 : vector<1x4x256xf32>
    %cst_18 = arith.constant 1.000000e+00 : f32
    %41 = vector.broadcast %cst_18 : f32 to vector<1x4x1xf32>
    %42 = arith.subf %41, %31 : vector<1x4x1xf32>
    %43 = vector.broadcast %42 : vector<1x4x1xf32> to vector<1x4x256xf32>
    %44 = arith.addf %40, %43 : vector<1x4x256xf32>
    %c0_19 = arith.constant 0 : index
    %c8_20 = arith.constant 8 : index
    %c0_21 = arith.constant 0 : index
    %45 = vector.load %arg3[%c0_19, %c8_20, %c0_21] : memref<1x15x256xf32, #tpu.memory_space<vmem>>, vector<1x4x256xf32>
    tpu.vector_store %arg3[%c0_19, %c8_20, %c0_21], %44 {strides = array<i32>} : memref<1x15x256xf32, #tpu.memory_space<vmem>>, vector<1x4x256xf32>,
    %c0_22 = arith.constant 0 : index
    %c12 = arith.constant 12 : index
    %c0_23 = arith.constant 0 : index
    %46 = vector.load %arg1[%c0_22, %c12, %c0_23] : memref<1x15x256xf32, #tpu.memory_space<vmem>>, vector<1x3x256xf32>
    %cst_24 = arith.constant dense<0xFF800000> : vector<1x3xf32>
    %47 = vector.multi_reduction <maximumf>, %46, %cst_24 [2] : vector<1x3x256xf32> to vector<1x3xf32>
    %48 = vector.shape_cast %47 : vector<1x3xf32> to vector<1x3x1xf32>
    %49 = vector.broadcast %48 : vector<1x3x1xf32> to vector<1x3x256xf32>
    %50 = arith.subf %46, %49 : vector<1x3x256xf32>
    %51 = math.exp %50 : vector<1x3x256xf32>
    %cst_25 = arith.constant dense<0.000000e+00> : vector<1x3xf32>
    %52 = vector.multi_reduction <add>, %51, %cst_25 [2] : vector<1x3x256xf32> to vector<1x3xf32>
    %53 = vector.shape_cast %52 : vector<1x3xf32> to vector<1x3x1xf32>
    %54 = tpu.reciprocal %53 : vector<1x3x1xf32> -> vector<1x3x1xf32>
    %c0_26 = arith.constant 0 : index
    %c16 = arith.constant 16 : index
    %c0_27 = arith.constant 0 : index
    %55 = vector.load %arg2[%c0_26, %c16, %c0_27] : memref<1x19x1xf32, #tpu.memory_space<vmem>>, vector<1x3x1xf32>
    %56 = arith.mulf %54, %55 : vector<1x3x1xf32>
    %57 = vector.broadcast %56 : vector<1x3x1xf32> to vector<1x3x256xf32>
    %58 = arith.mulf %51, %57 : vector<1x3x256xf32>
    %c0_28 = arith.constant 0 : index
    %c12_29 = arith.constant 12 : index
    %c0_30 = arith.constant 0 : index
    %59 = vector.load %arg3[%c0_28, %c12_29, %c0_30] : memref<1x15x256xf32, #tpu.memory_space<vmem>>, vector<1x3x256xf32>
    tpu.vector_store %arg3[%c0_28, %c12_29, %c0_30], %58 {strides = array<i32>} : memref<1x15x256xf32, #tpu.memory_space<vmem>>, vector<1x3x256xf32>,
    return
  }
  func.func @transform_0(%arg0: i32) -> (i32, i32, i32) {
    %c0_i32 = arith.constant 0 : i32
    %c0_i32_0 = arith.constant 0 : i32
    %c0_i32_1 = arith.constant 0 : i32
    return %arg0, %c0_i32, %c0_i32_0 : i32, i32, i32
  }
  func.func @transform_1(%arg0: i32) -> (i32, i32, i32) {
    %c0_i32 = arith.constant 0 : i32
    %c0_i32_0 = arith.constant 0 : i32
    %c0_i32_1 = arith.constant 0 : i32
    return %arg0, %c0_i32, %c0_i32_0 : i32, i32, i32
  }
  func.func @transform_2(%arg0: i32) -> (i32, i32, i32) {
    %c0_i32 = arith.constant 0 : i32
    %c0_i32_0 = arith.constant 0 : i32
    %c0_i32_1 = arith.constant 0 : i32
    return %arg0, %c0_i32, %c0_i32_0 : i32, i32, i32
  }
}

</mosaic_0001>

<llo_original>
// kernel: tpu_custom_call.1
$region0: #{tpu_custom_call.1}
  #allocation0 [shape = 'u32[]', space=smem, size = 0x4, offset = 0x4, fixed_abs, tag = 'smem constant byte address 0x4 - core index']
  #allocation1 [shape = 'u32[72,128]{1,0:T(1,128)}', space=vmem, size = 0x9000, scoped, tag = 'internal scratch']
  %s0 = inlined_call_operand.vmem [shape: f32[2,15,256], index: 0, kind: input, shape index: {}]
  %s1 = inlined_call_operand.vmem [shape: f32[2,19,1], index: 1, kind: input, shape index: {}]
  %s2 = inlined_call_operand.vmem [shape: f32[2,15,256], index: 2, kind: output, shape index: {}]
  %s3 = sld [smem:[#allocation0]]
  $region41: #{tpu_custom_call.1} parent=0
    _
  %s5 = ssub.s32 1, %s3
  %s6 = scalar_select 0, %s5, %s3
  loop: start=0, step=1, limit=4
  $region2: #{tpu_custom_call.1} parent=0 // loop_pre_header
    _
  $region3: #{tpu_custom_call.1} parent=0 // loop_header
    %s8 = sphi 0, %s12
    %p9 = scmp.ge.s32.totalorder %s8, 4
    %s18 = sphi 0, %s20
    %s21 = sphi 0, %s18
    %s22 = sphi 0, %s21
    %s38 = sphi 0, %s22
    %s44 = sphi 0, %s46
    %s47 = sphi 0, %s44
    %s48 = sphi 0, %s47
    %s64 = sphi 0, %s48
    %s70 = sphi 0, %s72
    %s73 = sphi 0, %s70
    %s74 = sphi 0, %s73
    %s90 = sphi 0, %s74
  $region4: #{tpu_custom_call.1} parent=0 // loop_header_branch
    %11 = sbr.rel (%p9) target = $region8
  $region5: #{tpu_custom_call.1} parent=0 // loop_body
    %s13 = ssub.s32 %s8, 1
    %s14 = ssub.s32 %s8, 2
    %s15 = sadd.s32 %s8, 1
    %s16 = ssub.s32 %s8, %s15
    %p17 = scmp.eq.s32.totalorder %s16, 0
    %s19 = sadd.s32 %s18, 1
    %s20 = scalar_select %p17, %s18, %s19
    %p23 = pneg %p17
    %p24 = scmp.eq.s32.totalorder %s8, 1
    %p25 = por %p23, %p24
    %p26 = scmp.ne.s32.totalorder %s18, %s21
    %p27 = scmp.eq.s32.totalorder %s8, 0
    %p28 = por %p26, %p27
    %p29 = scmp.ne.s32.totalorder %s18, %s21
    %p30 = scmp.eq.s32.totalorder %s13, 1
    %p31 = por %p29, %p30
    %p32 = scmp.ne.s32.totalorder %s21, %s22
    %p33 = scmp.eq.s32.totalorder %s13, 0
    %p34 = por %p32, %p33
    %p35 = scmp.ne.s32.totalorder %s21, %s22
    %p36 = scmp.eq.s32.totalorder %s14, 1
    %p37 = por %p35, %p36
    %p39 = scmp.ne.s32.totalorder %s22, %s38
    %p40 = scmp.eq.s32.totalorder %s14, 0
    %p41 = por %p39, %p40
    %s42 = ssub.s32 %s8, %s15
    %p43 = scmp.eq.s32.totalorder %s42, 0
    %s45 = sadd.s32 %s44, 1
    %s46 = scalar_select %p43, %s44, %s45
    %p49 = pneg %p43
    %p50 = scmp.eq.s32.totalorder %s8, 1
    %p51 = por %p49, %p50
    %p52 = scmp.ne.s32.totalorder %s44, %s47
    %p53 = scmp.eq.s32.totalorder %s8, 0
    %p54 = por %p52, %p53
    %p55 = scmp.ne.s32.totalorder %s44, %s47
    %p56 = scmp.eq.s32.totalorder %s13, 1
    %p57 = por %p55, %p56
    %p58 = scmp.ne.s32.totalorder %s47, %s48
    %p59 = scmp.eq.s32.totalorder %s13, 0
    %p60 = por %p58, %p59
    %p61 = scmp.ne.s32.totalorder %s47, %s48
    %p62 = scmp.eq.s32.totalorder %s14, 1
    %p63 = por %p61, %p62
    %p65 = scmp.ne.s32.totalorder %s48, %s64
    %p66 = scmp.eq.s32.totalorder %s14, 0
    %p67 = por %p65, %p66
    %s68 = ssub.s32 %s8, %s15
    %p69 = scmp.eq.s32.totalorder %s68, 0
    %s71 = sadd.s32 %s70, 1
    %s72 = scalar_select %p69, %s70, %s71
    %p75 = pneg %p69
    %p76 = scmp.eq.s32.totalorder %s8, 1
    %p77 = por %p75, %p76
    %p78 = scmp.ne.s32.totalorder %s70, %s73
    %p79 = scmp.eq.s32.totalorder %s8, 0
    %p80 = por %p78, %p79
    %p81 = scmp.ne.s32.totalorder %s70, %s73
    %p82 = scmp.eq.s32.totalorder %s13, 1
    %p83 = por %p81, %p82
    %p84 = scmp.ne.s32.totalorder %s73, %s74
    %p85 = scmp.eq.s32.totalorder %s13, 0
    %p86 = por %p84, %p85
    %p87 = scmp.ne.s32.totalorder %s73, %s74
    %p88 = scmp.eq.s32.totalorder %s14, 1
    %p89 = por %p87, %p88
    %p91 = scmp.ne.s32.totalorder %s74, %s90
    %p92 = scmp.eq.s32.totalorder %s14, 0
    %p93 = por %p91, %p92
    %p94 = scmp.le.s32.totalorder 1, %s8
    %p95 = scmp.lt.s32.totalorder %s8, 3
    %p96 = pnand %p94, %p95
    %p97 = pneg %p96
    // Predicated region
    $region9: #{tpu_custom_call.1} parent=5 // pred_check
      _
    $region10: #{tpu_custom_call.1} parent=5 // pred_check_branch
      %99 = sbr.rel (%p96) target = $region12
    $region11: #{tpu_custom_call.1} parent=5 // pred_region
      %s100 = ssub.s32 %s8, 1
    $region12: #{tpu_custom_call.1} parent=5 // pred_fallthru
      _
    %p101 = scmp.lt.s32.totalorder %s8, 2
    // Predicated region
    $region13: #{tpu_custom_call.1} parent=5 // pred_check
      %p102 = pneg %p101
    $region14: #{tpu_custom_call.1} parent=5 // pred_check_branch
      %104 = sbr.rel (%p102) target = $region16
    $region15: #{tpu_custom_call.1} parent=5 // pred_region
      // Predicated region
      $region17: #{tpu_custom_call.1} parent=15 // pred_check
        %p105 = pneg %p28
      $region18: #{tpu_custom_call.1} parent=15 // pred_check_branch
        %107 = sbr.rel (%p105) target = $region20
      $region19: #{tpu_custom_call.1} parent=15 // pred_region
        %p108 = scmp.lt.s32.totalorder %s8, 1
        %s109 = scalar_select %p108, %s8, 1
        %s110 = smul.addr %s109, 4
        %s111 = smul.addr %s110, 8
        %s112 = scalar_lea.vmem %s0, %s111
      $region20: #{tpu_custom_call.1} parent=15 // pred_fallthru
        _
      // Predicated region
      $region21: #{tpu_custom_call.1} parent=15 // pred_check
        %p113 = pneg %p54
      $region22: #{tpu_custom_call.1} parent=15 // pred_check_branch
        %115 = sbr.rel (%p113) target = $region24
      $region23: #{tpu_custom_call.1} parent=15 // pred_region
        %p116 = scmp.lt.s32.totalorder %s8, 1
        %s117 = scalar_select %p116, %s8, 1
        %s118 = smul.addr %s117, 3
        %s119 = smul.addr %s118, 8
        %s120 = scalar_lea.vmem %s1, %s119
      $region24: #{tpu_custom_call.1} parent=15 // pred_fallthru
        _
    $region16: #{tpu_custom_call.1} parent=5 // pred_fallthru
      _
    %p121 = scmp.le.s32.totalorder 1, %s8
    %p122 = scmp.lt.s32.totalorder %s8, 3
    %p123 = pnand %p121, %p122
    %p124 = pneg %p123
    // Predicated region
    $region25: #{tpu_custom_call.1} parent=5 // pred_check
      _
    $region26: #{tpu_custom_call.1} parent=5 // pred_check_branch
      %126 = sbr.rel (%p123) target = $region28
    $region27: #{tpu_custom_call.1} parent=5 // pred_region
      %s127 = ssub.s32 %s8, 1
      %p128 = scmp.lt.s32.totalorder %s13, 1
      %s129 = scalar_select %p128, %s13, 1
      %s130 = smul.addr %s129, 4
      %s131 = smul.addr %s130, 8
      %s132 = scalar_lea.vmem %s0, %s131
      %p133 = pneg %p34
      %p134 = pneg %p31
      %p135 = scmp.lt.s32.totalorder %s13, 1
      %s136 = scalar_select %p135, %s13, 1
      %s137 = smul.addr %s136, 3
      %s138 = smul.addr %s137, 8
      %s139 = scalar_lea.vmem %s1, %s138
      %p140 = pneg %p60
      %p141 = pneg %p57
      %p142 = pneg %p86
      %p143 = pneg %p83
      %p144 = scmp.lt.s32.totalorder %s13, 1
      %s145 = scalar_select %p144, %s13, 1
      %s146 = smul.addr %s145, 4
      %s147 = smul.addr %s146, 8
      %s148 = scalar_lea.vmem %s2, %s147
      %p149 = scmp.lt.s32.totalorder %s13, 1
      %s150 = scalar_select %p149, %s13, 1
      %s151 = smul.addr %s150, 4
      %s152 = smul.addr %s151, 8
      %s153 = scalar_lea.vmem %s0, %s152
      %p154 = scmp.lt.s32.totalorder %s13, 1
      %s155 = scalar_select %p154, %s13, 1
      %s156 = smul.addr %s155, 3
      %s157 = smul.addr %s156, 8
      %s158 = scalar_lea.vmem %s1, %s157
      %p159 = scmp.lt.s32.totalorder %s13, 1
      %s160 = scalar_select %p159, %s13, 1
      %s161 = smul.addr %s160, 4
      %s162 = smul.addr %s161, 8
      %s163 = scalar_lea.vmem %s2, %s162
      %v164 = vld [vmem:[%s153] sm:$0xff]
      %v165 = vld [vmem:[%s153 + $0x8] sm:$0xff]
      %v166 = vmax.f32 %v164, %v165
      %167 = vmax.xlane.f32.xlu0 %v166
      %v168 = vpop.xlane.xlu0 %167
      %v169 = vsub.f32 %v164, %v168
      %v170 = vsub.f32 %v165, %v168
      %v171 = vmul.f32 %v169, 1.442695
      %v172 = vpow.pop %v171
      %v173 = vmul.f32 %v170, 1.442695
      %v174 = vpow.pop %v173
      %v175 = vadd.f32 %v172, %v174
      %176 = vadd.xlane.f32.xlu0 %v175
      %v177 = vpop.xlane.xlu0 %176
      %v178 = vrcp.pop %v177
      %v179 = vmul.f32 %v177, %v178
      %v180 = vsub.f32 1.0, %v179
      %v181 = vmul.f32 %v178, %v180
      %v182 = vadd.f32 %v178, %v181
      %vm183 = vweird.f32 %v177
      %vm184 = vweird.f32 %v178
      %vm185 = vmor %vm183, %vm184
      %v186 = vsel %vm185, %v178, %v182
      %v187 = vand.u32 2147483647, %v177
      %vm188 = vcmp.eq.f32.partialorder %v187, 8.507059e+37
      %v189 = vand.u32 %v177, 2147483648
      %v190 = vor.u32 1.1754944e-38, %v189
      %v191 = vsel %vm188, %v190, %v186
      %v192 = vld [vmem:[%s158] sm:$0xff]
      %v193 = vld [vmem:[%s158 + $0x8] sm:$0xff]
      %v194 = vmul.f32 %v191, %v192
      %196 = vset.pattern.permute.xlu0 0
      %197 = vperm.xlu0 %196, %v194
      %v198 = vpop.permute.xlu0 %197
      %v200 = vmul.f32 %v172, %v198
      %v201 = vmul.f32 %v174, %v198
      %203 = vset.pattern.permute.xlu0 0
      %204 = vperm.xlu0 %203, %v193
      %v205 = vpop.permute.xlu0 %204
      %v207 = vadd.f32 %v200, %v205
      %v208 = vadd.f32 %v201, %v205
      %v209 = vrot.slane %v207, 4
      %v210 = vadd.f32 %v207, %v209
      %v211 = vrot.slane %v210, 2
      %v212 = vadd.f32 %v210, %v211
      %v213 = vrot.slane %v212, 1
      %v214 = vadd.f32 %v212, %v213
      %v215 = vrot.slane %v208, 4
      %v216 = vadd.f32 %v208, %v215
      %v217 = vrot.slane %v216, 2
      %v218 = vadd.f32 %v216, %v217
      %v219 = vrot.slane %v218, 1
      %v220 = vadd.f32 %v218, %v219
      %v221 = vrcp.pop %v214
      %v222 = vmul.f32 %v214, %v221
      %v223 = vsub.f32 1.0, %v222
      %v224 = vmul.f32 %v221, %v223
      %v225 = vadd.f32 %v221, %v224
      %vm226 = vweird.f32 %v214
      %vm227 = vweird.f32 %v221
      %vm228 = vmor %vm226, %vm227
      %v229 = vsel %vm228, %v221, %v225
      %v230 = vand.u32 2147483647, %v214
      %vm231 = vcmp.eq.f32.partialorder %v230, 8.507059e+37
      %v232 = vand.u32 %v214, 2147483648
      %v233 = vor.u32 1.1754944e-38, %v232
      %v234 = vsel %vm231, %v233, %v229
      %v235 = vrcp.pop %v220
      %v236 = vmul.f32 %v220, %v235
      %v237 = vsub.f32 1.0, %v236
      %v238 = vmul.f32 %v235, %v237
      %v239 = vadd.f32 %v235, %v238
      %vm240 = vweird.f32 %v220
      %vm241 = vweird.f32 %v235
      %vm242 = vmor %vm240, %vm241
      %v243 = vsel %vm242, %v235, %v239
      %v244 = vand.u32 2147483647, %v220
      %vm245 = vcmp.eq.f32.partialorder %v244, 8.507059e+37
      %v246 = vand.u32 %v220, 2147483648
      %v247 = vor.u32 1.1754944e-38, %v246
      %v248 = vsel %vm245, %v247, %v243
      %v249 = vmul.f32 %v207, %v234
      %v250 = vmul.f32 %v208, %v248
      %251 = vst [vmem:[%s163] sm:$0xff] %v249
      %252 = vst [vmem:[%s163 + $0x8] sm:$0xff] %v250
      %v253 = vld [vmem:[%s153 + $0x10] sm:$0xf]
      %v254 = vld [vmem:[%s153 + $0x18] sm:$0xf]
      %v255 = vlaneseq
      %v256 = vshrl.u32 %v255, 7
      %vm257 = vcmp.ge.s32.totalorder %v256, 1
      %vm258 = vcmp.le.s32.totalorder %v256, 2
      %vm259 = vmand %vm257, %vm258
      %v260 = vsel %vm259, 2.0, 1.0
      %v261 = vmul.f32 %v253, %v260
      %v262 = vmul.f32 %v254, %v260
      %v263 = vxor.u32 %v261, 2147483648
      %v264 = vxor.u32 %v262, 2147483648
      %v265 = vmul.f32 %v263, 1.442695
      %v266 = vpow.pop %v265
      %v267 = vmul.f32 %v264, 1.442695
      %v268 = vpow.pop %v267
      %v269 = vadd.f32 %v266, 1.0
      %v270 = vadd.f32 %v268, 1.0
      %v271 = vrcp.pop %v269
      %v272 = vmul.f32 %v269, %v271
      %v273 = vsub.f32 1.0, %v272
      %v274 = vmul.f32 %v271, %v273
      %v275 = vadd.f32 %v271, %v274
      %vm276 = vweird.f32 %v269
      %vm277 = vweird.f32 %v271
      %vm278 = vmor %vm276, %vm277
      %v279 = vsel %vm278, %v271, %v275
      %v280 = vand.u32 2147483647, %v269
      %vm281 = vcmp.eq.f32.partialorder %v280, 8.507059e+37
      %v282 = vand.u32 %v269, 2147483648
      %v283 = vor.u32 1.1754944e-38, %v282
      %v284 = vsel %vm281, %v283, %v279
      %v285 = vmul.f32 1.0, %v284
      %v286 = vrcp.pop %v270
      %v287 = vmul.f32 %v270, %v286
      %v288 = vsub.f32 1.0, %v287
      %v289 = vmul.f32 %v286, %v288
      %v290 = vadd.f32 %v286, %v289
      %vm291 = vweird.f32 %v270
      %vm292 = vweird.f32 %v286
      %vm293 = vmor %vm291, %vm292
      %v294 = vsel %vm293, %v286, %v290
      %v295 = vand.u32 2147483647, %v270
      %vm296 = vcmp.eq.f32.partialorder %v295, 8.507059e+37
      %v297 = vand.u32 %v270, 2147483648
      %v298 = vor.u32 1.1754944e-38, %v297
      %v299 = vsel %vm296, %v298, %v294
      %v300 = vmul.f32 1.0, %v299
      %v301 = vmul.f32 %v285, %v260
      %v302 = vmul.f32 %v300, %v260
      %v303 = vsub.f32 1.0, %v260
      %v304 = vadd.f32 %v301, %v303
      %v305 = vadd.f32 %v302, %v303
      %306 = vst [vmem:[%s163 + $0x10] sm:$0xf] %v304
      %307 = vst [vmem:[%s163 + $0x18] sm:$0xf] %v305
      %v308 = vld [vmem:[%s153 + $0x10] sm:$0x70]
      %v309 = vld [vmem:[%s153 + $0x18] sm:$0x70]
      %vm310 = vcmask 1046532
      %v311 = vsel %vm310, %v308, -inf
      %v312 = vsel %vm310, %v309, -inf
      %v313 = vmax.f32 %v311, %v312
      %314 = vmax.xlane.f32.xlu0 %v313
      %v315 = vpop.xlane.xlu0 %314
      %v316 = vsub.f32 %v308, %v315
      %v317 = vsub.f32 %v309, %v315
      %v318 = vmul.f32 %v316, 1.442695
      %v319 = vpow.pop %v318
      %v320 = vmul.f32 %v317, 1.442695
      %v321 = vpow.pop %v320
      %v322 = vsel %vm310, %v319, 0.0
      %v323 = vsel %vm310, %v321, 0.0
      %v324 = vadd.f32 %v322, %v323
      %325 = vadd.xlane.f32.xlu0 %v324
      %v326 = vpop.xlane.xlu0 %325
      %v327 = vrcp.pop %v326
      %v328 = vmul.f32 %v326, %v327
      %v329 = vsub.f32 1.0, %v328
      %v330 = vmul.f32 %v327, %v329
      %v331 = vadd.f32 %v327, %v330
      %vm332 = vweird.f32 %v326
      %vm333 = vweird.f32 %v327
      %vm334 = vmor %vm332, %vm333
      %v335 = vsel %vm334, %v327, %v331
      %v336 = vand.u32 2147483647, %v326
      %vm337 = vcmp.eq.f32.partialorder %v336, 8.507059e+37
      %v338 = vand.u32 %v326, 2147483648
      %v339 = vor.u32 1.1754944e-38, %v338
      %v340 = vsel %vm337, %v339, %v335
      %v341 = vld [vmem:[%s158 + $0x10] sm:$0x7]
      %v343 = vrot.slane %v341, 4
      %v345 = vmul.f32 %v340, %v343
      %347 = vset.pattern.permute.xlu0 0
      %348 = vperm.xlu0 %347, %v345
      %v349 = vpop.permute.xlu0 %348
      %v351 = vmul.f32 %v319, %v349
      %v352 = vmul.f32 %v321, %v349
      %353 = vst [vmem:[%s163 + $0x10] sm:$0x70] %v351
      %354 = vst [vmem:[%s163 + $0x18] sm:$0x70] %v352
      %p355 = scmp.lt.s32.totalorder %s13, 1
      %s356 = scalar_select %p355, %s13, 1
      %s357 = smul.addr %s356, 4
      %s358 = smul.addr %s357, 8
      %s359 = scalar_lea.vmem %s2, %s358
      // Predicated region
      $region29: #{tpu_custom_call.1} parent=27 // pred_check
        %p360 = pneg %p83
      $region30: #{tpu_custom_call.1} parent=27 // pred_check_branch
        %362 = sbr.rel (%p360) target = $region32
      $region31: #{tpu_custom_call.1} parent=27 // pred_region
        _
      $region32: #{tpu_custom_call.1} parent=27 // pred_fallthru
        _
    $region28: #{tpu_custom_call.1} parent=5 // pred_fallthru
      _
    %p363 = scmp.le.s32.totalorder 2, %s8
    // Predicated region
    $region33: #{tpu_custom_call.1} parent=5 // pred_check
      %p364 = pneg %p363
    $region34: #{tpu_custom_call.1} parent=5 // pred_check_branch
      %366 = sbr.rel (%p364) target = $region36
    $region35: #{tpu_custom_call.1} parent=5 // pred_region
      %s367 = ssub.s32 %s8, 2
      // Predicated region
      $region37: #{tpu_custom_call.1} parent=35 // pred_check
        %p368 = pneg %p89
      $region38: #{tpu_custom_call.1} parent=35 // pred_check_branch
        %370 = sbr.rel (%p368) target = $region40
      $region39: #{tpu_custom_call.1} parent=35 // pred_region
        %p371 = scmp.lt.s32.totalorder %s14, 1
        %s372 = scalar_select %p371, %s14, 1
        %s373 = smul.addr %s372, 4
        %s374 = smul.addr %s373, 8
        %s375 = scalar_lea.vmem %s2, %s374
      $region40: #{tpu_custom_call.1} parent=35 // pred_fallthru
        _
    $region36: #{tpu_custom_call.1} parent=5 // pred_fallthru
      _
  $region6: #{tpu_custom_call.1} parent=0 // loop_footer
    %s12 = sadd.s32 1, %s8
  $region7: #{tpu_custom_call.1} parent=0 // loop_footer_branch
    %7 = sbr.rel target = $region3
  $region8: #{tpu_custom_call.1} parent=0 // loop_exit
    _

</llo_original>
